<compile_context>
chip_gen: v6e
topology: v6e:2x2x1
jax: 0.10.0
libtpu: 0.0.40
codegen_flags: <defaults>
</compile_context>

<pallas_src>
import jax
import jax.numpy as jnp
import numpy as np
from jax.experimental import pallas as pl
from jax.experimental.pallas import tpu as pltpu


# --------------------------------------------------------------------------- #
# Kernel
# --------------------------------------------------------------------------- #
def _make_subnet_sum_kernel(num_constraints: int):
    """Kernel body with static L (constraints per sub-net). Weights/bias arrive
    already scaled by n and negated/transposed, so the dot result is n*y directly."""
    c0 = float(1 - num_constraints)

    def kernel(x_ref, wt_ref, b_ref, o_ref):
        # x_ref:(TB, D)  wt_ref:(D, L)  b_ref:(1, L)  o_ref:(TB, 1)
        k = pl.program_id(1)                      # sub-net index (inner grid axis)

        ny = jnp.dot(x_ref[...], wt_ref[...],
                     preferred_element_type=jnp.float32) + b_ref[...]
        # relu(ny + 1) - relu(ny) == clip(ny + 1, 0, 1)  (exact): one VPU clamp and
        # one XLU reduction instead of two of each.
        clipped = jnp.minimum(jnp.maximum(ny + 1.0, 0.0), 1.0)
        s = c0 + jnp.sum(clipped, axis=-1, keepdims=True)
        contrib = jnp.maximum(s, 0.0)             # relu -> this sub-net's output

        # Output block index is constant along k: it stays resident in VMEM and acts
        # as the NetSum accumulator; HBM writeback happens once per batch tile.
        @pl.when(k == 0)
        def _init():
            o_ref[...] = contrib

        @pl.when(k != 0)
        def _accumulate():
            o_ref[...] = o_ref[...] + contrib

    return kernel


# --------------------------------------------------------------------------- #
# Tiling helpers
# --------------------------------------------------------------------------- #
def _round_up(x: int, m: int) -> int:
    return ((x + m - 1) // m) * m


def _pick_batch_tile(batch: int, d: int, l: int, vmem_budget_bytes: int) -> int:
    """Largest multiple-of-8 batch tile (capped at 1024) whose per-step working set
    (double-buffered x tile + double-buffered (D, L) weight slab + f32 temporaries +
    output block) fits the VMEM budget. Budget defaults are conservative for v5e
    (16 MiB default scoped), v6e (32 MiB scoped) and v7x (64 MiB physical)."""
    bytes_per_row = 4 * (2 * d + 2 * l + 2)       # x (x2 buffers) + ny + clip + out
    resident = 4 * 2 * (d * l + l)                # W^T slab + bias (x2 buffers)
    tile = min(1024, _round_up(batch, 8))
    max_rows = max(8, (vmem_budget_bytes - resident) // max(bytes_per_row, 1))
    tile = max(8, min(tile, (max_rows // 8) * 8))
    # Give the grid >= 2 batch steps when the batch allows it, so the BlockSpec
    # pipeline overlaps DMA/compute and both v7x TensorCores get work on the
    # "parallel" batch axis.
    if _round_up(batch, 8) > 8 and (_round_up(batch, 8) + tile - 1) // tile < 2:
        tile = max(8, (_round_up(batch, 16) // 2 // 8) * 8)
    return tile


# --------------------------------------------------------------------------- #
# Wrappers
# --------------------------------------------------------------------------- #
def reassure_subnet_sum(x, A_stack, b_stack, n, *, batch_tile=None, use_bf16=False,
                        vmem_budget_bytes=16 << 20, vmem_limit_bytes=32 << 20):
    """sum_k SupportNet_k(x) as one fused Pallas kernel.

    x: (B, D) f32; A_stack: (K, L, D); b_stack: (K, L); n: sharpness constant.
    Returns (B, 1) f32.
    """
    x = jnp.asarray(x)
    A_stack = jnp.asarray(A_stack, jnp.float32)
    b_stack = jnp.asarray(b_stack, jnp.float32)
    if x.dtype != jnp.bfloat16:
        x = x.astype(jnp.float32)

    B, D = x.shape
    K, L, D2 = A_stack.shape
    assert D == D2 and b_stack.shape == (K, L)

    # Fold sharpness n and the negation/transpose into the small constant operands
    # once, in the wrapper (removes a per-tile (TB, L) VPU multiply from the kernel;
    # the streamed x is untouched).
    wt_all = jnp.transpose(-A_stack, (0, 2, 1)) * jnp.float32(n)      # (K, D, L)
    b_all = (jnp.float32(n) * b_stack).reshape(K, 1, L)               # (K, 1, L)

    if use_bf16:
        # Optional: halves HBM traffic on the streamed x (the binding resource).
        # NOTE: n amplifies matmul rounding near constraint boundaries - validate
        # tolerance before relying on this path.
        x = x.astype(jnp.bfloat16)
        wt_all = wt_all.astype(jnp.bfloat16)

    if batch_tile is None:
        batch_tile = _pick_batch_tile(B, D, L, vmem_budget_bytes)
    if batch_tile <= 0 or batch_tile % 8 != 0:
        raise ValueError("batch_tile must be a positive multiple of 8 (TPU sublane)")

    # Ragged batches: pad to a tile multiple instead of asserting divisibility.
    num_tiles = max(1, -(-B // batch_tile))
    B_pad = num_tiles * batch_tile
    if B_pad != B:
        x = jnp.pad(x, ((0, B_pad - B), (0, 0)))

    # TODO(synk): if L grows to many thousands, add a third innermost "arbitrary"
    # grid axis over L-tiles instead of keeping the full (D, L) slab resident
    # (the clip-sum decomposes over L; the (1-L) constant and final relu move to
    # the last L step).
    kernel = _make_subnet_sum_kernel(L)
    out = pl.pallas_call(
        kernel,
        out_shape=jax.ShapeDtypeStruct((B_pad, 1), jnp.float32),
        grid_spec=pltpu.PrefetchScalarGridSpec(
            num_scalar_prefetch=0,
            grid=(num_tiles, K),        # batch tiles outer (parallel), sub-nets inner
            in_specs=[
                # Streamed x tile; block index constant along k so it is fetched from
                # HBM once per batch tile. (If profiling still shows exposed DMA, bump
                # this spec to pipeline_mode=pl.Buffered(3).)
                pl.BlockSpec((batch_tile, D), lambda i, k: (i, 0)),
                pl.BlockSpec((None, D, L), lambda i, k: (k, 0, 0)),   # W^T of sub-net k
                pl.BlockSpec((None, 1, L), lambda i, k: (k, 0, 0)),   # bias of sub-net k
            ],
            # (TB, 1) output layout kept knowingly: masked stores, but output traffic
            # is only B*4 bytes so a lane-dense (1, TB) layout buys nothing here.
            out_specs=pl.BlockSpec((batch_tile, 1), lambda i, k: (i, 0)),
        ),
        compiler_params=pltpu.CompilerParams(
            dimension_semantics=("parallel", "arbitrary"),
            # Explicit scoped-VMEM limit: lets v5e (16 MiB default) use the same
            # roofline-friendly tile as v6e/v7x while staying well inside v7x's
            # 64 MiB physical VMEM.
            vmem_limit_bytes=vmem_limit_bytes,
        ),
    )(x, wt_all, b_all)
    return out[:B]


def net_sum_forward(x, target_net, A_stack, b_stack, n, **kwargs):
    """NetSum.forward: out = target_net(x); out += each sub_net on (flattened) x.

    The Python loop over sub_nets is fused into a single pallas_call above."""
    # TODO(synk): target_net is an arbitrary nn.Module in the spec; evaluated here as
    # a user-supplied plain-JAX callable rather than translated to Pallas generically.
    out = target_net(x)
    x_sub = x.reshape(x.shape[0], -1) if x.ndim >= 3 else x
    return out + reassure_subnet_sum(x_sub, A_stack, b_stack, n, **kwargs)


# --------------------------------------------------------------------------- #
# Pure-JAX reference (faithful translation of the PyTorch forward)
# --------------------------------------------------------------------------- #
def net_sum_reference(x, target_net, A_stack, b_stack, n):
    out = target_net(x)
    x_sub = x.reshape(x.shape[0], -1) if x.ndim >= 3 else x
    L = A_stack.shape[1]
    for k in range(A_stack.shape[0]):
        y = x_sub @ (-A_stack[k]).T + b_stack[k]
        s = (-L + 1.0) \
            + jnp.sum(jax.nn.relu(n * y + 1.0), -1, keepdims=True) \
            - jnp.sum(jax.nn.relu(n * y), -1, keepdims=True)
        out = out + jax.nn.relu(s)
    return out


# --------------------------------------------------------------------------- #
# Demo / self-test
# --------------------------------------------------------------------------- #
if __name__ == "__main__":
    key = jax.random.PRNGKey(0)
    kA, kb, kx, kW, kB = jax.random.split(key, 5)

    # Rank-3 input (B, 4, 8) so NetSum's flatten branch is exercised; D = 32 features,
    # K = 2 sub-nets with L = 16 polytope constraints each.
    B, C, S = 128, 4, 8
    D = C * S
    K, L = 2, 16
    # Sharpness constant ("large number" in REASSURE). Kept moderate so the f32
    # self-check tolerance below stays meaningful: n amplifies tiny matmul rounding
    # differences near constraint boundaries into O(n*eps) output jumps.
    n = 1.0e3

    A_stack = jax.random.normal(kA, (K, L, D), dtype=jnp.float32)
    b_stack = jax.random.normal(kb, (K, L), dtype=jnp.float32)
    x = jax.random.normal(kx, (B, C, S), dtype=jnp.float32)
    Wt_t = jax.random.normal(kW, (D, 1), dtype=jnp.float32) * 0.1
    bt_t = jax.random.normal(kB, (1,), dtype=jnp.float32)

    def target_net(xx):  # stand-in for the arbitrary target_net module
        return xx.reshape(xx.shape[0], -1) @ Wt_t + bt_t

    ref = net_sum_reference(x, target_net, A_stack, b_stack, n)

    # 1) Default path: auto-sized batch tile (>= 2 batch grid steps here).
    out = jax.block_until_ready(net_sum_forward(x, target_net, A_stack, b_stack, n))
    assert out.shape == (B, 1)
    np.testing.assert_allclose(np.asarray(out), np.asarray(ref), rtol=1e-3, atol=2e-2)

    # 2) Explicit smaller batch tile: 4 batch tiles x 2 sub-nets grid.
    out2 = jax.block_until_ready(
        net_sum_forward(x, target_net, A_stack, b_stack, n, batch_tile=32))
    np.testing.assert_allclose(np.asarray(out2), np.asarray(ref), rtol=1e-3, atol=2e-2)

    # 3) Optional bf16 streamed-operand path; with large n the result is only
    #    piecewise-stable near constraint boundaries, so sanity-check only.
    out3 = jax.block_until_ready(
        net_sum_forward(x, target_net, A_stack, b_stack, n, use_bf16=True))
    assert out3.shape == (B, 1) and bool(jnp.all(jnp.isfinite(out3)))

    print("KERNEL_OK")
</pallas_src>

<mosaic_0001>
module attributes {stable_mosaic.version = 11 : i64} {
  func.func @kernel(%arg0: i32, %arg1: i32, %arg2: memref<64x32xf32, #tpu.memory_space<vmem>>, %arg3: memref<1x32x16xf32, #tpu.memory_space<vmem>>, %arg4: memref<1x1x16xf32, #tpu.memory_space<vmem>>, %arg5: memref<64x1xf32, #tpu.memory_space<vmem>>) attributes {dimension_semantics = [#tpu.dimension_semantics<parallel>, #tpu.dimension_semantics<arbitrary>], iteration_bounds = array<i64: 2, 2>, scalar_prefetch = 0 : i64, scratch_operands = 0 : i64, tpu.core_type = #tpu.core_type<tc>, window_params = [{transform_indices = @transform_0, window_bounds = array<i64: 64, 32>}, {transform_indices = @transform_1, window_bounds = array<i64: 1, 32, 16>}, {transform_indices = @transform_2, window_bounds = array<i64: 1, 1, 16>}, {transform_indices = @transform_3, window_bounds = array<i64: 64, 1>}]} {
    %c0 = arith.constant 0 : index
    %c0_0 = arith.constant 0 : index
    %0 = vector.load %arg2[%c0, %c0_0] : memref<64x32xf32, #tpu.memory_space<vmem>>, vector<64x32xf32>
    %c0_1 = arith.constant 0 : index
    %c0_2 = arith.constant 0 : index
    %c0_3 = arith.constant 0 : index
    %1 = vector.load %arg3[%c0_1, %c0_2, %c0_3] : memref<1x32x16xf32, #tpu.memory_space<vmem>>, vector<1x32x16xf32>
    %2 = vector.shape_cast %1 : vector<1x32x16xf32> to vector<32x16xf32>
    %cst = arith.constant dense<0.000000e+00> : vector<64x16xf32>
    %3 = tpu.matmul %0, %2, %cst {dimension_numbers = #tpu.dot_dimension_numbers<[1], [0], [0], [1], [0, 0, 1, 1], [], []>} : vector<64x32xf32>, vector<32x16xf32>, vector<64x16xf32> -> vector<64x16xf32>
    %c0_4 = arith.constant 0 : index
    %c0_5 = arith.constant 0 : index
    %c0_6 = arith.constant 0 : index
    %4 = vector.load %arg4[%c0_4, %c0_5, %c0_6] : memref<1x1x16xf32, #tpu.memory_space<vmem>>, vector<1x1x16xf32>
    %5 = vector.shape_cast %4 : vector<1x1x16xf32> to vector<1x16xf32>
    %6 = vector.broadcast %5 : vector<1x16xf32> to vector<64x16xf32>
    %7 = arith.addf %3, %6 : vector<64x16xf32>
    %cst_7 = arith.constant 1.000000e+00 : f32
    %8 = vector.broadcast %cst_7 : f32 to vector<64x16xf32>
    %9 = arith.addf %7, %8 : vector<64x16xf32>
    %cst_8 = arith.constant 0.000000e+00 : f32
    %10 = vector.broadcast %cst_8 : f32 to vector<64x16xf32>
    %11 = arith.maximumf %9, %10 : vector<64x16xf32>
    %cst_9 = arith.constant 1.000000e+00 : f32
    %12 = vector.broadcast %cst_9 : f32 to vector<64x16xf32>
    %13 = arith.minimumf %11, %12 : vector<64x16xf32>
    %cst_10 = arith.constant dense<0.000000e+00> : vector<64xf32>
    %14 = vector.multi_reduction <add>, %13, %cst_10 [1] : vector<64x16xf32> to vector<64xf32>
    %15 = vector.shape_cast %14 : vector<64xf32> to vector<64x1xf32>
    %cst_11 = arith.constant -1.500000e+01 : f32
    %16 = vector.broadcast %cst_11 : f32 to vector<64x1xf32>
    %17 = arith.addf %16, %15 : vector<64x1xf32>
    %cst_12 = arith.constant 0.000000e+00 : f32
    %18 = vector.broadcast %cst_12 : f32 to vector<64x1xf32>
    %19 = arith.maximumf %17, %18 : vector<64x1xf32>
    %c0_i32 = arith.constant 0 : i32
    %20 = arith.cmpi eq, %arg1, %c0_i32 : i32
    %21 = arith.extui %20 : i1 to i32
    %c0_i32_13 = arith.constant 0 : i32
    %22 = arith.cmpi ne, %21, %c0_i32_13 : i32
    scf.if %22 {
      %c0_16 = arith.constant 0 : index
      %c0_17 = arith.constant 0 : index
      %26 = vector.load %arg5[%c0_16, %c0_17] : memref<64x1xf32, #tpu.memory_space<vmem>>, vector<64x1xf32>
      tpu.vector_store %arg5[%c0_16, %c0_17], %19 {strides = array<i32>} : memref<64x1xf32, #tpu.memory_space<vmem>>, vector<64x1xf32>,
    } else {
    }
    %c0_i32_14 = arith.constant 0 : i32
    %23 = arith.cmpi ne, %arg1, %c0_i32_14 : i32
    %24 = arith.extui %23 : i1 to i32
    %c0_i32_15 = arith.constant 0 : i32
    %25 = arith.cmpi ne, %24, %c0_i32_15 : i32
    scf.if %25 {
      %c0_16 = arith.constant 0 : index
      %c0_17 = arith.constant 0 : index
      %26 = vector.load %arg5[%c0_16, %c0_17] : memref<64x1xf32, #tpu.memory_space<vmem>>, vector<64x1xf32>
      %27 = arith.addf %26, %19 : vector<64x1xf32>
      %c0_18 = arith.constant 0 : index
      %c0_19 = arith.constant 0 : index
      %28 = vector.load %arg5[%c0_18, %c0_19] : memref<64x1xf32, #tpu.memory_space<vmem>>, vector<64x1xf32>
      tpu.vector_store %arg5[%c0_18, %c0_19], %27 {strides = array<i32>} : memref<64x1xf32, #tpu.memory_space<vmem>>, vector<64x1xf32>,
    } else {
    }
    return
  }
  func.func @transform_0(%arg0: i32, %arg1: i32) -> (i32, i32) {
    %c0_i32 = arith.constant 0 : i32
    %c0_i32_0 = arith.constant 0 : i32
    return %arg0, %c0_i32 : i32, i32
  }
  func.func @transform_1(%arg0: i32, %arg1: i32) -> (i32, i32, i32) {
    %c0_i32 = arith.constant 0 : i32
    %c0_i32_0 = arith.constant 0 : i32
    %c0_i32_1 = arith.constant 0 : i32
    return %arg1, %c0_i32, %c0_i32_0 : i32, i32, i32
  }
  func.func @transform_2(%arg0: i32, %arg1: i32) -> (i32, i32, i32) {
    %c0_i32 = arith.constant 0 : i32
    %c0_i32_0 = arith.constant 0 : i32
    %c0_i32_1 = arith.constant 0 : i32
    return %arg1, %c0_i32, %c0_i32_0 : i32, i32, i32
  }
  func.func @transform_3(%arg0: i32, %arg1: i32) -> (i32, i32) {
    %c0_i32 = arith.constant 0 : i32
    %c0_i32_0 = arith.constant 0 : i32
    return %arg0, %c0_i32 : i32, i32
  }
}

</mosaic_0001>

<llo_original>
// kernel: tpu_custom_call.1
$region0: #{tpu_custom_call.1}
  #allocation0 [shape = 'u32[]', space=smem, size = 0x4, offset = 0x4, fixed_abs, tag = 'smem constant byte address 0x4 - core index']
  #allocation1 [shape = 'u32[144,128]{1,0:T(1,128)}', space=vmem, size = 0x12000, scoped, tag = 'internal scratch']
  %s0 = inlined_call_operand.vmem [shape: f32[128,32], index: 0, kind: input, shape index: {}]
  %s1 = inlined_call_operand.vmem [shape: f32[2,32,16], index: 1, kind: input, shape index: {}]
  %s2 = inlined_call_operand.vmem [shape: f32[2,1,16], index: 2, kind: input, shape index: {}]
  %s3 = inlined_call_operand.vmem [shape: f32[128,1], index: 3, kind: output, shape index: {}]
  %s4 = sld [smem:[#allocation0]]
  $region53: #{tpu_custom_call.1} parent=0
    _
  %s6 = ssub.s32 1, %s4
  %s7 = scalar_select 0, %s6, %s4
  loop: start=0, step=1, limit=6
  $region2: #{tpu_custom_call.1} parent=0 // loop_pre_header
    _
  $region3: #{tpu_custom_call.1} parent=0 // loop_header
    %s9 = sphi 0, %s13
    %p10 = scmp.ge.s32.totalorder %s9, 6
    %s16 = sphi 0, %s28
    %s17 = sphi 0, %s24
    %s18 = sphi 0, %s16
    %s19 = sphi 0, %s17
    %s20 = sphi 0, %s18
    %s21 = sphi 0, %s19
    %s31 = sphi 0, %s33
    %s34 = sphi 0, %s31
    %s35 = sphi 0, %s34
    %s51 = sphi 0, %s35
    %s57 = sphi 0, %s59
    %s60 = sphi 0, %s57
    %s61 = sphi 0, %s60
    %s77 = sphi 0, %s61
    %s83 = sphi 0, %s85
    %s86 = sphi 0, %s83
    %s87 = sphi 0, %s86
    %s103 = sphi 0, %s87
    %s109 = sphi 0, %s111
    %s112 = sphi 0, %s109
    %s113 = sphi 0, %s112
    %s129 = sphi 0, %s113
  $region4: #{tpu_custom_call.1} parent=0 // loop_header_branch
    %12 = sbr.rel (%p10) target = $region8
  $region5: #{tpu_custom_call.1} parent=0 // loop_body
    %s14 = ssub.s32 %s9, 1
    %s15 = ssub.s32 %s9, 2
    %s22 = sadd.s32 1, %s17
    %p23 = scmp.ge.s32.totalorder %s22, 2
    %s24 = scalar_select %p23, 0, %s22
    %s25 = sadd.s32 1, %s16
    %s26 = scalar_select %p23, %s25, %s16
    %p27 = scmp.ge.s32.totalorder %s26, 2
    %s28 = scalar_select %p27, 0, %s26
    %s29 = ssub.s32 %s16, %s28
    %p30 = scmp.eq.s32.totalorder %s29, 0
    %s32 = sadd.s32 %s31, 1
    %s33 = scalar_select %p30, %s31, %s32
    %p36 = pneg %p30
    %p37 = scmp.eq.s32.totalorder %s9, 3
    %p38 = por %p36, %p37
    %p39 = scmp.ne.s32.totalorder %s31, %s34
    %p40 = scmp.eq.s32.totalorder %s9, 0
    %p41 = por %p39, %p40
    %p42 = scmp.ne.s32.totalorder %s31, %s34
    %p43 = scmp.eq.s32.totalorder %s14, 3
    %p44 = por %p42, %p43
    %p45 = scmp.ne.s32.totalorder %s34, %s35
    %p46 = scmp.eq.s32.totalorder %s14, 0
    %p47 = por %p45, %p46
    %p48 = scmp.ne.s32.totalorder %s34, %s35
    %p49 = scmp.eq.s32.totalorder %s15, 3
    %p50 = por %p48, %p49
    %p52 = scmp.ne.s32.totalorder %s35, %s51
    %p53 = scmp.eq.s32.totalorder %s15, 0
    %p54 = por %p52, %p53
    %s55 = ssub.s32 %s17, %s24
    %p56 = scmp.eq.s32.totalorder %s55, 0
    %s58 = sadd.s32 %s57, 1
    %s59 = scalar_select %p56, %s57, %s58
    %p62 = pneg %p56
    %p63 = scmp.eq.s32.totalorder %s9, 3
    %p64 = por %p62, %p63
    %p65 = scmp.ne.s32.totalorder %s57, %s60
    %p66 = scmp.eq.s32.totalorder %s9, 0
    %p67 = por %p65, %p66
    %p68 = scmp.ne.s32.totalorder %s57, %s60
    %p69 = scmp.eq.s32.totalorder %s14, 3
    %p70 = por %p68, %p69
    %p71 = scmp.ne.s32.totalorder %s60, %s61
    %p72 = scmp.eq.s32.totalorder %s14, 0
    %p73 = por %p71, %p72
    %p74 = scmp.ne.s32.totalorder %s60, %s61
    %p75 = scmp.eq.s32.totalorder %s15, 3
    %p76 = por %p74, %p75
    %p78 = scmp.ne.s32.totalorder %s61, %s77
    %p79 = scmp.eq.s32.totalorder %s15, 0
    %p80 = por %p78, %p79
    %s81 = ssub.s32 %s17, %s24
    %p82 = scmp.eq.s32.totalorder %s81, 0
    %s84 = sadd.s32 %s83, 1
    %s85 = scalar_select %p82, %s83, %s84
    %p88 = pneg %p82
    %p89 = scmp.eq.s32.totalorder %s9, 3
    %p90 = por %p88, %p89
    %p91 = scmp.ne.s32.totalorder %s83, %s86
    %p92 = scmp.eq.s32.totalorder %s9, 0
    %p93 = por %p91, %p92
    %p94 = scmp.ne.s32.totalorder %s83, %s86
    %p95 = scmp.eq.s32.totalorder %s14, 3
    %p96 = por %p94, %p95
    %p97 = scmp.ne.s32.totalorder %s86, %s87
    %p98 = scmp.eq.s32.totalorder %s14, 0
    %p99 = por %p97, %p98
    %p100 = scmp.ne.s32.totalorder %s86, %s87
    %p101 = scmp.eq.s32.totalorder %s15, 3
    %p102 = por %p100, %p101
    %p104 = scmp.ne.s32.totalorder %s87, %s103
    %p105 = scmp.eq.s32.totalorder %s15, 0
    %p106 = por %p104, %p105
    %s107 = ssub.s32 %s16, %s28
    %p108 = scmp.eq.s32.totalorder %s107, 0
    %s110 = sadd.s32 %s109, 1
    %s111 = scalar_select %p108, %s109, %s110
    %p114 = pneg %p108
    %p115 = scmp.eq.s32.totalorder %s9, 3
    %p116 = por %p114, %p115
    %p117 = scmp.ne.s32.totalorder %s109, %s112
    %p118 = scmp.eq.s32.totalorder %s9, 0
    %p119 = por %p117, %p118
    %p120 = scmp.ne.s32.totalorder %s109, %s112
    %p121 = scmp.eq.s32.totalorder %s14, 3
    %p122 = por %p120, %p121
    %p123 = scmp.ne.s32.totalorder %s112, %s113
    %p124 = scmp.eq.s32.totalorder %s14, 0
    %p125 = por %p123, %p124
    %p126 = scmp.ne.s32.totalorder %s112, %s113
    %p127 = scmp.eq.s32.totalorder %s15, 3
    %p128 = por %p126, %p127
    %p130 = scmp.ne.s32.totalorder %s113, %s129
    %p131 = scmp.eq.s32.totalorder %s15, 0
    %p132 = por %p130, %p131
    %p133 = scmp.le.s32.totalorder 1, %s9
    %p134 = scmp.lt.s32.totalorder %s9, 5
    %p135 = pnand %p133, %p134
    %p136 = pneg %p135
    // Predicated region
    $region9: #{tpu_custom_call.1} parent=5 // pred_check
      _
    $region10: #{tpu_custom_call.1} parent=5 // pred_check_branch
      %138 = sbr.rel (%p135) target = $region12
    $region11: #{tpu_custom_call.1} parent=5 // pred_region
      %s139 = ssub.s32 %s9, 1
    $region12: #{tpu_custom_call.1} parent=5 // pred_fallthru
      _
    %p140 = scmp.lt.s32.totalorder %s9, 4
    // Predicated region
    $region13: #{tpu_custom_call.1} parent=5 // pred_check
      %p141 = pneg %p140
    $region14: #{tpu_custom_call.1} parent=5 // pred_check_branch
      %143 = sbr.rel (%p141) target = $region16
    $region15: #{tpu_custom_call.1} parent=5 // pred_region
      // Predicated region
      $region17: #{tpu_custom_call.1} parent=15 // pred_check
        %p144 = pneg %p41
      $region18: #{tpu_custom_call.1} parent=15 // pred_check_branch
        %146 = sbr.rel (%p144) target = $region20
      $region19: #{tpu_custom_call.1} parent=15 // pred_region
        %s147 = smul.u32 8, %s16
        %p148 = scmp.lt.s32.totalorder %s147, 15
        %s149 = scalar_select %p148, %s147, 15
        %s150 = smul.addr %s149, 8
        %s151 = scalar_lea.vmem %s0, %s150
        %s152 = smul.u32 8, %s16
      $region20: #{tpu_custom_call.1} parent=15 // pred_fallthru
        _
      // Predicated region
      $region21: #{tpu_custom_call.1} parent=15 // pred_check
        %p153 = pneg %p67
      $region22: #{tpu_custom_call.1} parent=15 // pred_check_branch
        %155 = sbr.rel (%p153) target = $region24
      $region23: #{tpu_custom_call.1} parent=15 // pred_region
        %p156 = scmp.lt.s32.totalorder %s17, 1
        %s157 = scalar_select %p156, %s17, 1
        %s158 = smul.addr %s157, 4
        %s159 = smul.addr %s158, 8
        %s160 = scalar_lea.vmem %s1, %s159
      $region24: #{tpu_custom_call.1} parent=15 // pred_fallthru
        _
      // Predicated region
      $region25: #{tpu_custom_call.1} parent=15 // pred_check
        %p161 = pneg %p93
      $region26: #{tpu_custom_call.1} parent=15 // pred_check_branch
        %163 = sbr.rel (%p161) target = $region28
      $region27: #{tpu_custom_call.1} parent=15 // pred_region
        %p164 = scmp.lt.s32.totalorder %s17, 1
        %s165 = scalar_select %p164, %s17, 1
        %s166 = scalar_lea.vmem %s2, %s165
      $region28: #{tpu_custom_call.1} parent=15 // pred_fallthru
        _
    $region16: #{tpu_custom_call.1} parent=5 // pred_fallthru
      _
    %p167 = scmp.le.s32.totalorder 1, %s9
    %p168 = scmp.lt.s32.totalorder %s9, 5
    %p169 = pnand %p167, %p168
    %p170 = pneg %p169
    // Predicated region
    $region29: #{tpu_custom_call.1} parent=5 // pred_check
      _
    $region30: #{tpu_custom_call.1} parent=5 // pred_check_branch
      %172 = sbr.rel (%p169) target = $region32
    $region31: #{tpu_custom_call.1} parent=5 // pred_region
      %s173 = ssub.s32 %s9, 1
      %s174 = smul.u32 8, %s18
      %p175 = scmp.lt.s32.totalorder %s174, 15
      %s176 = scalar_select %p175, %s174, 15
      %s177 = smul.addr %s176, 8
      %s178 = scalar_lea.vmem %s0, %s177
      %p179 = pneg %p47
      %p180 = pneg %p44
      %p181 = scmp.lt.s32.totalorder %s19, 1
      %s182 = scalar_select %p181, %s19, 1
      %s183 = smul.addr %s182, 4
      %s184 = smul.addr %s183, 8
      %s185 = scalar_lea.vmem %s1, %s184
      %p186 = pneg %p73
      %p187 = pneg %p70
      %p188 = scmp.lt.s32.totalorder %s19, 1
      %s189 = scalar_select %p188, %s19, 1
      %s190 = scalar_lea.vmem %s2, %s189
      %p191 = pneg %p99
      %p192 = pneg %p96
      %p193 = pneg %p125
      %p194 = pneg %p122
      %s195 = smul.u32 8, %s18
      %p196 = scmp.lt.s32.totalorder %s195, 15
      %s197 = scalar_select %p196, %s195, 15
      %s198 = smul.addr %s197, 8
      %s199 = scalar_lea.vmem %s3, %s198
      %s200 = smul.u32 8, %s18
      %p201 = scmp.lt.s32.totalorder %s200, 15
      %s202 = scalar_select %p201, %s200, 15
      %s203 = smul.addr %s202, 8
      %s204 = scalar_lea.vmem %s0, %s203
      %s205 = smul.u32 8, %s18
      %p206 = scmp.lt.s32.totalorder %s19, 1
      %s207 = scalar_select %p206, %s19, 1
      %s208 = smul.addr %s207, 4
      %s209 = smul.addr %s208, 8
      %s210 = scalar_lea.vmem %s1, %s209
      %p211 = scmp.lt.s32.totalorder %s19, 1
      %s212 = scalar_select %p211, %s19, 1
      %s213 = scalar_lea.vmem %s2, %s212
      %s214 = smul.u32 8, %s18
      %p215 = scmp.lt.s32.totalorder %s214, 15
      %s216 = scalar_select %p215, %s214, 15
      %s217 = smul.addr %s216, 8
      %s218 = scalar_lea.vmem %s3, %s217
      %s219 = smul.u32 8, %s18
      %v220 = vld [vmem:[%s204] sm:$0xff]
      %v221 = vld [vmem:[%s204 + $0x8] sm:$0xff]
      %v222 = vld [vmem:[%s204 + $0x10] sm:$0xff]
      %v223 = vld [vmem:[%s204 + $0x18] sm:$0xff]
      %v224 = vld [vmem:[%s204 + $0x20] sm:$0xff]
      %v225 = vld [vmem:[%s204 + $0x28] sm:$0xff]
      %v226 = vld [vmem:[%s204 + $0x30] sm:$0xff]
      %v227 = vld [vmem:[%s204 + $0x38] sm:$0xff]
      %v228 = vld [vmem:[%s210] sm:$0xff]
      %v229 = vld [vmem:[%s210 + $0x8] sm:$0xff]
      %v230 = vld [vmem:[%s210 + $0x10] sm:$0xff]
      %v231 = vld [vmem:[%s210 + $0x18] sm:$0xff]
      %v232 = vld [vmem:[%s213] sm:$0x1]
      %v234 = vlaneseq
      %v235 = vshrl.u32 %v234, 7
      %v236 = vsub.s32 0, %v235
      %v237 = vrot.slane %v232, %v236
      %vm239 = vcmask 261120
      %v241 = vsel %vm239, %v220, 0
      %v244 = vsel %vm239, %v221, 0
      %v247 = vsel %vm239, %v222, 0
      %v250 = vsel %vm239, %v223, 0
      %v253 = vsel %vm239, %v224, 0
      %v256 = vsel %vm239, %v225, 0
      %v259 = vsel %vm239, %v226, 0
      %v262 = vsel %vm239, %v227, 0
      %264 = vmatprep.subr.mxu0 0.0
      %265 = vmatpush1.msra.mxu0 0.0
      %266 = vmatprep.subr.mxu0 0.0
      %267 = vmatpush1.msra.mxu0 0.0
      %268 = vmatprep.subr.mxu0 0.0
      %269 = vmatpush1.msra.mxu0 0.0
      %270 = vmatprep.subr.mxu0 0.0
      %271 = vmatpush1.msra.mxu0 0.0
      %272 = vmatprep.subr.mxu0 0.0
      %273 = vmatpush1.msra.mxu0 0.0
      %274 = vmatprep.subr.mxu0 0.0
      %275 = vmatpush1.msra.mxu0 0.0
      %276 = vmatprep.subr.mxu0 0.0
      %277 = vmatpush1.msra.mxu0 0.0
      %278 = vmatprep.subr.mxu0 0.0
      %279 = vmatpush1.msra.mxu0 0.0
      %280 = vmatprep.subr.mxu0 0.0
      %281 = vmatpush1.msra.mxu0 0.0
      %282 = vmatprep.subr.mxu0 0.0
      %283 = vmatpush1.msra.mxu0 0.0
      %284 = vmatprep.subr.mxu0 0.0
      %285 = vmatpush1.msra.mxu0 0.0
      %286 = vmatprep.subr.mxu0 0.0
      %287 = vmatpush1.msra.mxu0 0.0
      %288 = vmatprep.subr.mxu0 0.0
      %289 = vmatpush1.msra.mxu0 %v231
      %290 = vmatprep.subr.mxu0 0.0
      %291 = vmatpush1.msra.mxu0 %v230
      %292 = vmatprep.subr.mxu0 0.0
      %293 = vmatpush1.msra.mxu0 %v229
      %294 = vmatprep.subr.mxu0 0.0
      %295 = vmatpush1.msra.mxu0 %v228
      %296 = vmatprep.subr.mxu0 0.0
      %297 = vmatpush2.msra.mxu0 0.0
      %298 = vmatprep.subr.mxu0 0.0
      %299 = vmatpush2.msra.mxu0 0.0
      %300 = vmatprep.subr.mxu0 0.0
      %301 = vmatpush2.msra.mxu0 0.0
      %302 = vmatprep.subr.mxu0 0.0
      %303 = vmatpush2.msra.mxu0 0.0
      %304 = vmatprep.subr.mxu0 0.0
      %305 = vmatpush2.msra.mxu0 0.0
      %306 = vmatprep.subr.mxu0 0.0
      %307 = vmatpush2.msra.mxu0 0.0
      %308 = vmatprep.subr.mxu0 0.0
      %309 = vmatpush2.msra.mxu0 0.0
      %310 = vmatprep.subr.mxu0 0.0
      %311 = vmatpush2.msra.mxu0 0.0
      %312 = vmatprep.subr.mxu0 0.0
      %313 = vmatpush2.msra.mxu0 0.0
      %314 = vmatprep.subr.mxu0 0.0
      %315 = vmatpush2.msra.mxu0 0.0
      %316 = vmatprep.subr.mxu0 0.0
      %317 = vmatpush2.msra.mxu0 0.0
      %318 = vmatprep.subr.mxu0 0.0
      %319 = vmatpush2.msra.mxu0 0.0
      %320 = vmatprep.subr.mxu0 0.0
      %321 = vmatpush2.msra.mxu0 0.0
      %322 = vmatprep.subr.mxu0 0.0
      %323 = vmatpush2.msra.mxu0 0.0
      %324 = vmatprep.subr.mxu0 0.0
      %325 = vmatpush2.msra.mxu0 0.0
      %326 = vmatprep.subr.mxu0 0.0
      %327 = vmatpush2.msra.mxu0 0.0
      %328 = vmatprep.mubr.f32.mxu0 0.0
      %329 = vmatmul.mubr.f32.gmra.mxu0 %v241
      %v330 = vpop.f32.mrf.mxu0
      %v331 = vadd.f32 %v237, %v330
      %v332 = vpop.f32.mrf.mxu0
      %333 = vmatprep.mubr.f32.mxu0 0.0
      %334 = vmatmul.mubr.f32.gmra.mxu0 %v244
      %v335 = vpop.f32.mrf.mxu0
      %v336 = vadd.f32 %v237, %v335
      %v337 = vpop.f32.mrf.mxu0
      %338 = vmatprep.mubr.f32.mxu0 0.0
      %339 = vmatmul.mubr.f32.gmra.mxu0 %v247
      %v340 = vpop.f32.mrf.mxu0
      %v341 = vadd.f32 %v237, %v340
      %v342 = vpop.f32.mrf.mxu0
      %343 = vmatprep.mubr.f32.mxu0 0.0
      %344 = vmatmul.mubr.f32.gmra.mxu0 %v250
      %v345 = vpop.f32.mrf.mxu0
      %v346 = vadd.f32 %v237, %v345
      %v347 = vpop.f32.mrf.mxu0
      %348 = vmatprep.mubr.f32.mxu0 0.0
      %349 = vmatmul.mubr.f32.gmra.mxu0 %v253
      %v350 = vpop.f32.mrf.mxu0
      %v351 = vadd.f32 %v237, %v350
      %v352 = vpop.f32.mrf.mxu0
      %353 = vmatprep.mubr.f32.mxu0 0.0
      %354 = vmatmul.mubr.f32.gmra.mxu0 %v256
      %v355 = vpop.f32.mrf.mxu0
      %v356 = vadd.f32 %v237, %v355
      %v357 = vpop.f32.mrf.mxu0
      %358 = vmatprep.mubr.f32.mxu0 0.0
      %359 = vmatmul.mubr.f32.gmra.mxu0 %v259
      %v360 = vpop.f32.mrf.mxu0
      %v361 = vadd.f32 %v237, %v360
      %v362 = vpop.f32.mrf.mxu0
      %363 = vmatprep.mubr.f32.mxu0 0.0
      %364 = vmatmul.mubr.f32.gmra.mxu0 %v262
      %v365 = vpop.f32.mrf.mxu0
      %v366 = vadd.f32 %v237, %v365
      %v367 = vpop.f32.mrf.mxu0
      %368 = vdwg.mxu0
      %v369 = vadd.f32 %v331, 1.0
      %v370 = vadd.f32 %v336, 1.0
      %v371 = vadd.f32 %v341, 1.0
      %v372 = vadd.f32 %v346, 1.0
      %v373 = vadd.f32 %v351, 1.0
      %v374 = vadd.f32 %v356, 1.0
      %v375 = vadd.f32 %v361, 1.0
      %v376 = vadd.f32 %v366, 1.0
      %v377 = vmax.f32 %v369, 0.0
      %v378 = vmax.f32 %v370, 0.0
      %v379 = vmax.f32 %v371, 0.0
      %v380 = vmax.f32 %v372, 0.0
      %v381 = vmax.f32 %v373, 0.0
      %v382 = vmax.f32 %v374, 0.0
      %v383 = vmax.f32 %v375, 0.0
      %v384 = vmax.f32 %v376, 0.0
      %v385 = vmin.f32 %v377, 1.0
      %v386 = vmin.f32 %v378, 1.0
      %v387 = vmin.f32 %v379, 1.0
      %v388 = vmin.f32 %v380, 1.0
      %v389 = vmin.f32 %v381, 1.0
      %v390 = vmin.f32 %v382, 1.0
      %v391 = vmin.f32 %v383, 1.0
      %v392 = vmin.f32 %v384, 1.0
      %vm393 = vcmask 130048
      %v394 = vsel %vm393, %v385, 0.0
      %395 = vadd.xlane.f32.xlu0 %v394
      %v396 = vpop.xlane.xlu0 %395
      %v397 = vsel %vm393, %v386, 0.0
      %398 = vadd.xlane.f32.xlu0 %v397
      %v399 = vpop.xlane.xlu0 %398
      %v400 = vsel %vm393, %v387, 0.0
      %401 = vadd.xlane.f32.xlu0 %v400
      %v402 = vpop.xlane.xlu0 %401
      %v403 = vsel %vm393, %v388, 0.0
      %404 = vadd.xlane.f32.xlu0 %v403
      %v405 = vpop.xlane.xlu0 %404
      %v406 = vsel %vm393, %v389, 0.0
      %407 = vadd.xlane.f32.xlu0 %v406
      %v408 = vpop.xlane.xlu0 %407
      %v409 = vsel %vm393, %v390, 0.0
      %410 = vadd.xlane.f32.xlu0 %v409
      %v411 = vpop.xlane.xlu0 %410
      %v412 = vsel %vm393, %v391, 0.0
      %413 = vadd.xlane.f32.xlu0 %v412
      %v414 = vpop.xlane.xlu0 %413
      %v415 = vsel %vm393, %v392, 0.0
      %416 = vadd.xlane.f32.xlu0 %v415
      %v417 = vpop.xlane.xlu0 %416
      %v418 = vadd.f32 %v396, -15.0
      %v419 = vadd.f32 %v399, -15.0
      %v420 = vadd.f32 %v402, -15.0
      %v421 = vadd.f32 %v405, -15.0
      %v422 = vadd.f32 %v408, -15.0
      %v423 = vadd.f32 %v411, -15.0
      %v424 = vadd.f32 %v414, -15.0
      %v425 = vadd.f32 %v417, -15.0
      %v426 = vmax.f32 %v418, 0.0
      %v427 = vmax.f32 %v419, 0.0
      %v428 = vmax.f32 %v420, 0.0
      %v429 = vmax.f32 %v421, 0.0
      %v430 = vmax.f32 %v422, 0.0
      %v431 = vmax.f32 %v423, 0.0
      %v432 = vmax.f32 %v424, 0.0
      %v433 = vmax.f32 %v425, 0.0
      %p434 = scmp.eq.s32.totalorder %s19, 0
      // Predicated region
      $region33: #{tpu_custom_call.1} parent=31 // pred_check
        %p435 = pneg %p434
      $region34: #{tpu_custom_call.1} parent=31 // pred_check_branch
        %437 = sbr.rel (%p435) target = $region36
      $region35: #{tpu_custom_call.1} parent=31 // pred_region
        %vm438 = vcmask 7168
        %439 = vst.msk [vmem:[%s218] sm:$0xff] %vm438, %v426
        %440 = vst.msk [vmem:[%s218 + $0x8] sm:$0xff] %vm438, %v427
        %441 = vst.msk [vmem:[%s218 + $0x10] sm:$0xff] %vm438, %v428
        %442 = vst.msk [vmem:[%s218 + $0x18] sm:$0xff] %vm438, %v429
        %443 = vst.msk [vmem:[%s218 + $0x20] sm:$0xff] %vm438, %v430
        %444 = vst.msk [vmem:[%s218 + $0x28] sm:$0xff] %vm438, %v431
        %445 = vst.msk [vmem:[%s218 + $0x30] sm:$0xff] %vm438, %v432
        %446 = vst.msk [vmem:[%s218 + $0x38] sm:$0xff] %vm438, %v433
      $region36: #{tpu_custom_call.1} parent=31 // pred_fallthru
        _
      %p447 = scmp.ne.s32.totalorder %s19, 0
      // Predicated region
      $region37: #{tpu_custom_call.1} parent=31 // pred_check
        %p448 = pneg %p447
      $region38: #{tpu_custom_call.1} parent=31 // pred_check_branch
        %450 = sbr.rel (%p448) target = $region40
      $region39: #{tpu_custom_call.1} parent=31 // pred_region
        %v451 = vld [vmem:[%s218] sm:$0xff]
        %v452 = vld [vmem:[%s218 + $0x8] sm:$0xff]
        %v453 = vld [vmem:[%s218 + $0x10] sm:$0xff]
        %v454 = vld [vmem:[%s218 + $0x18] sm:$0xff]
        %v455 = vld [vmem:[%s218 + $0x20] sm:$0xff]
        %v456 = vld [vmem:[%s218 + $0x28] sm:$0xff]
        %v457 = vld [vmem:[%s218 + $0x30] sm:$0xff]
        %v458 = vld [vmem:[%s218 + $0x38] sm:$0xff]
        %v459 = vadd.f32 %v451, %v426
        %v460 = vadd.f32 %v452, %v427
        %v461 = vadd.f32 %v453, %v428
        %v462 = vadd.f32 %v454, %v429
        %v463 = vadd.f32 %v455, %v430
        %v464 = vadd.f32 %v456, %v431
        %v465 = vadd.f32 %v457, %v432
        %v466 = vadd.f32 %v458, %v433
        %vm467 = vcmask 7168
        %468 = vst.msk [vmem:[%s218] sm:$0xff] %vm467, %v459
        %469 = vst.msk [vmem:[%s218 + $0x8] sm:$0xff] %vm467, %v460
        %470 = vst.msk [vmem:[%s218 + $0x10] sm:$0xff] %vm467, %v461
        %471 = vst.msk [vmem:[%s218 + $0x18] sm:$0xff] %vm467, %v462
        %472 = vst.msk [vmem:[%s218 + $0x20] sm:$0xff] %vm467, %v463
        %473 = vst.msk [vmem:[%s218 + $0x28] sm:$0xff] %vm467, %v464
        %474 = vst.msk [vmem:[%s218 + $0x30] sm:$0xff] %vm467, %v465
        %475 = vst.msk [vmem:[%s218 + $0x38] sm:$0xff] %vm467, %v466
      $region40: #{tpu_custom_call.1} parent=31 // pred_fallthru
        _
      %s476 = smul.u32 8, %s18
      %p477 = scmp.lt.s32.totalorder %s476, 15
      %s478 = scalar_select %p477, %s476, 15
      %s479 = smul.addr %s478, 8
      %s480 = scalar_lea.vmem %s3, %s479
      // Predicated region
      $region41: #{tpu_custom_call.1} parent=31 // pred_check
        %p481 = pneg %p122
      $region42: #{tpu_custom_call.1} parent=31 // pred_check_branch
        %483 = sbr.rel (%p481) target = $region44
      $region43: #{tpu_custom_call.1} parent=31 // pred_region
        %s484 = smul.u32 8, %s18
      $region44: #{tpu_custom_call.1} parent=31 // pred_fallthru
        _
    $region32: #{tpu_custom_call.1} parent=5 // pred_fallthru
      _
    %p485 = scmp.le.s32.totalorder 2, %s9
    // Predicated region
    $region45: #{tpu_custom_call.1} parent=5 // pred_check
      %p486 = pneg %p485
    $region46: #{tpu_custom_call.1} parent=5 // pred_check_branch
      %488 = sbr.rel (%p486) target = $region48
    $region47: #{tpu_custom_call.1} parent=5 // pred_region
      %s489 = ssub.s32 %s9, 2
      // Predicated region
      $region49: #{tpu_custom_call.1} parent=47 // pred_check
        %p490 = pneg %p128
      $region50: #{tpu_custom_call.1} parent=47 // pred_check_branch
        %492 = sbr.rel (%p490) target = $region52
      $region51: #{tpu_custom_call.1} parent=47 // pred_region
        %s493 = smul.u32 8, %s20
        %p494 = scmp.lt.s32.totalorder %s493, 15
        %s495 = scalar_select %p494, %s493, 15
        %s496 = smul.addr %s495, 8
        %s497 = scalar_lea.vmem %s3, %s496
      $region52: #{tpu_custom_call.1} parent=47 // pred_fallthru
        _
    $region48: #{tpu_custom_call.1} parent=5 // pred_fallthru
      _
  $region6: #{tpu_custom_call.1} parent=0 // loop_footer
    %s13 = sadd.s32 1, %s9
  $region7: #{tpu_custom_call.1} parent=0 // loop_footer_branch
    %8 = sbr.rel target = $region3
  $region8: #{tpu_custom_call.1} parent=0 // loop_exit
    _

</llo_original>
